<compile_context>
chip_gen: v5e
topology: v5e:2x2
jax: 0.10.0
libtpu: 0.0.40
codegen_flags: <defaults>
</compile_context>

<pallas_src>
import functools

import jax
import jax.numpy as jnp
from jax import lax
from jax.experimental import pallas as pl
from jax.experimental.pallas import tpu as pltpu


def _round_up(v, m):
    return ((v + m - 1) // m) * m


# ---------------------------------------------------------------------------
# Phase A: support = x @ W   (feature-side matmul; F dims are small)
# ---------------------------------------------------------------------------
def _feature_matmul_kernel(x_ref, w_ref, out_ref):
    x = x_ref[...].astype(jnp.float32)
    w = w_ref[...].astype(jnp.float32)
    out_ref[...] = jnp.dot(x, w, preferred_element_type=jnp.float32).astype(out_ref.dtype)


def _feature_matmul(x, w, *, tm, out_dtype):
    n, f_in = x.shape
    f_out = w.shape[1]
    return pl.pallas_call(
        _feature_matmul_kernel,
        out_shape=jax.ShapeDtypeStruct((n, f_out), out_dtype),
        grid_spec=pltpu.PrefetchScalarGridSpec(
            num_scalar_prefetch=0,
            grid=(n // tm,),
            in_specs=[
                pl.BlockSpec((tm, f_in), lambda i: (i, 0)),     # streamed row tiles
                pl.BlockSpec((f_in, f_out), lambda i: (0, 0)),  # W resident across grid
            ],
            out_specs=pl.BlockSpec((tm, f_out), lambda i: (i, 0)),
        ),
        compiler_params=pltpu.CompilerParams(dimension_semantics=("parallel",)),
    )(x, w)


# ---------------------------------------------------------------------------
# Phase B: out = epilogue(adj @ support + b)   (K-reduction over adj columns)
# ---------------------------------------------------------------------------
def _adj_spmm_kernel(adj_ref, sup_ref, b_ref, out_ref, acc_ref, *,
                     activation, valid_cols):
    k = pl.program_id(1)

    @pl.when(k == 0)
    def _():
        acc_ref[...] = jnp.zeros_like(acc_ref)

    # bf16 x bf16 -> f32 accumulation on the MXU
    acc_ref[...] += jnp.dot(adj_ref[...], sup_ref[...],
                            preferred_element_type=jnp.float32)

    @pl.when(k == pl.num_programs(1) - 1)
    def _():
        z = acc_ref[...] + b_ref[...].astype(jnp.float32)
        if activation == "relu":
            out = jnp.maximum(z, 0.0)
        else:  # masked, max-stabilized log_softmax over the valid class lanes
            col = lax.broadcasted_iota(jnp.int32, z.shape, 1)
            z = jnp.where(col < valid_cols, z, -1e30)
            m = jnp.max(z, axis=-1, keepdims=True)
            e = jnp.exp(z - m)
            lse = jnp.log(jnp.sum(e, axis=-1, keepdims=True)) + m
            out = z - lse
        out_ref[...] = out.astype(out_ref.dtype)


def _adj_spmm(adj, support, bias, *, tm, tk, activation, valid_cols, out_dtype):
    n = adj.shape[0]
    f = support.shape[1]
    kernel = functools.partial(_adj_spmm_kernel, activation=activation,
                               valid_cols=valid_cols)
    return pl.pallas_call(
        kernel,
        out_shape=jax.ShapeDtypeStruct((n, f), out_dtype),
        grid_spec=pltpu.PrefetchScalarGridSpec(
            num_scalar_prefetch=0,
            grid=(n // tm, n // tk),
            in_specs=[
                pl.BlockSpec((tm, tk), lambda i, k: (i, k)),   # streamed adj tiles (bf16)
                pl.BlockSpec((tk, f), lambda i, k: (k, 0)),    # support slab per K step
                pl.BlockSpec((1, f), lambda i, k: (0, 0)),     # bias, resident (constant index)
            ],
            out_specs=pl.BlockSpec((tm, f), lambda i, k: (i, 0)),
            scratch_shapes=[pltpu.VMEM((tm, f), jnp.float32)],
        ),
        compiler_params=pltpu.CompilerParams(
            dimension_semantics=("parallel", "arbitrary")),
    )(adj, support, bias)


# ---------------------------------------------------------------------------
# Forward wrapper
# ---------------------------------------------------------------------------
def wrap_up_gcn_forward(x, adj, w1, b1, w2, b2):
    n, f_in = x.shape
    f_hid = w1.shape[1]
    f_out = w2.shape[1]
    assert adj.shape == (n, n)

    # Lane-dense padded feature dims, tile-aligned node dim.
    fi_p = _round_up(f_in, 128)
    fh_p = _round_up(f_hid, 128)
    fo_p = _round_up(f_out, 128)
    tile = min(512, _round_up(n, 128))   # 128-multiple tiles, capped at 512
    n_p = _round_up(n, tile)
    tm = tk = tile

    def pad2(a, r, c):
        return jnp.pad(a, ((0, r - a.shape[0]), (0, c - a.shape[1])))

    x_p = pad2(x.astype(jnp.float32), n_p, fi_p)
    adj_p = pad2(adj, n_p, n_p).astype(jnp.bfloat16)     # bf16 adj: halves HBM traffic
    w1_p = pad2(w1, fi_p, fh_p)
    b1_p = pad2(b1.reshape(1, -1), 1, fh_p)
    w2_p = pad2(w2, fh_p, fo_p)
    b2_p = pad2(b2.reshape(1, -1), 1, fo_p)

    # ---- GCN layer 1 ----
    sup1 = _feature_matmul(x_p, w1_p, tm=tm, out_dtype=jnp.bfloat16)
    h = _adj_spmm(adj_p, sup1, b1_p, tm=tm, tk=tk,
                  activation="relu", valid_cols=fh_p, out_dtype=jnp.bfloat16)
    # TODO(synk): dropout between layers is omitted (eval-mode semantics).

    # ---- GCN layer 2 ----
    sup2 = _feature_matmul(h, w2_p, tm=tm, out_dtype=jnp.bfloat16)
    z = _adj_spmm(adj_p, sup2, b2_p, tm=tm, tk=tk,
                  activation="log_softmax", valid_cols=f_out, out_dtype=jnp.float32)

    return z[:n, :f_out]


def reference_forward(x, adj, w1, b1, w2, b2):
    h = jnp.maximum(adj @ (x @ w1) + b1, 0.0)
    z = adj @ (h @ w2) + b2
    return jax.nn.log_softmax(z, axis=-1)


if __name__ == "__main__":
    key = jax.random.PRNGKey(0)
    k_x, k_a, k_w1, k_w2 = jax.random.split(key, 4)

    N, F_in, F_hid, F_out = 8, 16, 32, 8

    x = jax.random.normal(k_x, (N, F_in), dtype=jnp.float32)

    # Deterministic symmetric row-normalized adjacency with self-loops.
    a_raw = (jax.random.uniform(k_a, (N, N)) > 0.5).astype(jnp.float32)
    a_sym = jnp.maximum(a_raw, a_raw.T) + jnp.eye(N, dtype=jnp.float32)
    deg = jnp.sum(a_sym, axis=-1, keepdims=True)
    adj = a_sym / deg

    # Deterministic parameter init (Glorot-ish scaling).
    w1 = jax.random.normal(k_w1, (F_in, F_hid), dtype=jnp.float32) * (1.0 / F_in) ** 0.5
    b1 = jnp.zeros((1, F_hid), dtype=jnp.float32)
    w2 = jax.random.normal(k_w2, (F_hid, F_out), dtype=jnp.float32) * (1.0 / F_hid) ** 0.5
    b2 = jnp.zeros((1, F_out), dtype=jnp.float32)

    out = wrap_up_gcn_forward(x, adj, w1, b1, w2, b2)
    out = jax.block_until_ready(out)

    ref = reference_forward(x, adj, w1, b1, w2, b2)
    assert out.shape == (N, F_out)
    assert bool(jnp.all(jnp.isfinite(out)))
    # bf16 adjacency / support streaming -> relaxed tolerance vs the f32 reference.
    assert jnp.allclose(out, ref, atol=3e-2, rtol=3e-2), "mismatch vs reference"

    print("KERNEL_OK")
</pallas_src>

<mosaic_0001>
module attributes {stable_mosaic.version = 11 : i64} {
  func.func @_feature_matmul_kernel(%arg0: i32, %arg1: memref<128x128xf32, #tpu.memory_space<vmem>>, %arg2: memref<128x128xf32, #tpu.memory_space<vmem>>, %arg3: memref<128x128xbf16, #tpu.memory_space<vmem>>) attributes {dimension_semantics = [#tpu.dimension_semantics<parallel>], iteration_bounds = array<i64: 1>, scalar_prefetch = 0 : i64, scratch_operands = 0 : i64, tpu.core_type = #tpu.core_type<tc>, window_params = [{transform_indices = @transform_0, window_bounds = array<i64: 128, 128>}, {pipeline_mode = #tpu.pipeline_mode<synchronous>, transform_indices = @transform_1, window_bounds = array<i64: 128, 128>}, {transform_indices = @transform_2, window_bounds = array<i64: 128, 128>}]} {
    %c0 = arith.constant 0 : index
    %c0_0 = arith.constant 0 : index
    %0 = vector.load %arg1[%c0, %c0_0] : memref<128x128xf32, #tpu.memory_space<vmem>>, vector<128x128xf32>
    %c0_1 = arith.constant 0 : index
    %c0_2 = arith.constant 0 : index
    %1 = vector.load %arg2[%c0_1, %c0_2] : memref<128x128xf32, #tpu.memory_space<vmem>>, vector<128x128xf32>
    %cst = arith.constant dense<0.000000e+00> : vector<128x128xf32>
    %2 = tpu.matmul %0, %1, %cst {dimension_numbers = #tpu.dot_dimension_numbers<[1], [0], [0], [1], [0, 0, 1, 1], [], []>} : vector<128x128xf32>, vector<128x128xf32>, vector<128x128xf32> -> vector<128x128xf32>
    %3 = arith.truncf %2 : vector<128x128xf32> to vector<128x128xbf16>
    %c0_3 = arith.constant 0 : index
    %c0_4 = arith.constant 0 : index
    %4 = vector.load %arg3[%c0_3, %c0_4] : memref<128x128xbf16, #tpu.memory_space<vmem>>, vector<128x128xbf16>
    tpu.vector_store %arg3[%c0_3, %c0_4], %3 {strides = array<i32>} : memref<128x128xbf16, #tpu.memory_space<vmem>>, vector<128x128xbf16>,
    return
  }
  func.func @transform_0(%arg0: i32) -> (i32, i32) {
    %c0_i32 = arith.constant 0 : i32
    %c0_i32_0 = arith.constant 0 : i32
    return %arg0, %c0_i32 : i32, i32
  }
  func.func @transform_1(%arg0: i32) -> (i32, i32) {
    %c0_i32 = arith.constant 0 : i32
    %c0_i32_0 = arith.constant 0 : i32
    %c0_i32_1 = arith.constant 0 : i32
    return %c0_i32, %c0_i32_0 : i32, i32
  }
  func.func @transform_2(%arg0: i32) -> (i32, i32) {
    %c0_i32 = arith.constant 0 : i32
    %c0_i32_0 = arith.constant 0 : i32
    return %arg0, %c0_i32 : i32, i32
  }
}

</mosaic_0001>

<llo_original>
// kernel: tpu_custom_call.1
$region0: #{tpu_custom_call.1}
  #allocation0 [shape = 'u32[]', space=smem, size = 0x4, offset = 0x4, fixed_abs, tag = 'smem constant byte address 0x4 - core index']
  #allocation1 [shape = 'u32[72,128]{1,0:T(1,128)}', space=vmem, size = 0x9000, scoped, tag = 'internal scratch']
  %s0 = inlined_call_operand.hbm [shape: f32[128,128], index: 0, kind: input, shape index: {}]
  %s1 = inlined_call_operand.hbm [shape: f32[128,128], index: 1, kind: input, shape index: {}]
  %s2 = inlined_call_operand.hbm [shape: bf16[128,128], index: 2, kind: output, shape index: {}]
  %s3 = sld [smem:[#allocation0]]
  $region26: #{tpu_custom_call.1} parent=0
    _
  %s5 = ssub.s32 1, %s3
  %s6 = scalar_select 0, %s5, %s3
  $region1: #{tpu_custom_call.1} parent=0
    #allocation2 [shape = 'u8[65536]{0}', space=vmem, size = 0x10000, scoped, tag = 'input window, operand 0, single buffered']
    #allocation3 [shape = 's32[1]{0}', space=sflag, size = 0x4, scoped, tag = 'scoped memory for tpu_custom_call.1']
    #allocation4 [shape = 's32[1]{0}', space=sflag, size = 0x4, scoped, tag = 'scoped memory for tpu_custom_call.1']
    #allocation5 [shape = 'u8[65536]{0}', space=vmem, size = 0x10000, scoped, tag = 'input window, operand 1, single buffered']
    #allocation6 [shape = 's32[1]{0}', space=sflag, size = 0x4, scoped, tag = 'scoped memory for tpu_custom_call.1']
    #allocation7 [shape = 'u8[32768]{0}', space=vmem, size = 0x8000, scoped, tag = 'output window, operand 0, single buffered']
    %7 = vsyncpa [#allocation3], 0
    %8 = vsyncpa [#allocation6], 0
    %9 = vsyncpa [#allocation4], 0
    // Predicated region
    $region2: #{tpu_custom_call.1} parent=1 // pred_check
      _
    $region3: #{tpu_custom_call.1} parent=1 // pred_check_branch
      %11 = sbr.rel (0) target = $region5
    $region4: #{tpu_custom_call.1} parent=1 // pred_region
      %13 = vsyncadd [#allocation3], 0
      %s14 = sshll.u32 %s0, 4
      %s15 = int_to_ptr.hbm [resolvable:$true] %s14
      %s16 = sshll.u32 [#allocation2], 4
      %s17 = int_to_ptr.vmem [resolvable:$true] %s16
      %22 = dma.hbm_to_vmem [thread:$0]  %s15, 2048, %s17, [#allocation3], 128, 128, 8
    $region5: #{tpu_custom_call.1} parent=1 // pred_fallthru
      _
    // Predicated region
    $region6: #{tpu_custom_call.1} parent=1 // pred_check
      _
    $region7: #{tpu_custom_call.1} parent=1 // pred_check_branch
      %24 = sbr.rel (0) target = $region9
    $region8: #{tpu_custom_call.1} parent=1 // pred_region
      %26 = vsyncadd [#allocation6], 0
      %s27 = sshll.u32 %s1, 4
      %s28 = int_to_ptr.hbm [resolvable:$true] %s27
      %s29 = sshll.u32 [#allocation5], 4
      %s30 = int_to_ptr.vmem [resolvable:$true] %s29
      %35 = dma.hbm_to_vmem [thread:$0]  %s28, 2048, %s30, [#allocation6], 128, 128, 8
    $region9: #{tpu_custom_call.1} parent=1 // pred_fallthru
      _
    // Predicated region
    $region10: #{tpu_custom_call.1} parent=1 // pred_check
      _
    $region11: #{tpu_custom_call.1} parent=1 // pred_check_branch
      %37 = sbr.rel (0) target = $region13
    $region12: #{tpu_custom_call.1} parent=1 // pred_region
      %39 = dma.done [#allocation3], 2048
    $region13: #{tpu_custom_call.1} parent=1 // pred_fallthru
      _
    // Predicated region
    $region14: #{tpu_custom_call.1} parent=1 // pred_check
      _
    $region15: #{tpu_custom_call.1} parent=1 // pred_check_branch
      %41 = sbr.rel (0) target = $region17
    $region16: #{tpu_custom_call.1} parent=1 // pred_region
      %43 = dma.done [#allocation6], 2048
    $region17: #{tpu_custom_call.1} parent=1 // pred_fallthru
      _
    %v44 = vld [vmem:[#allocation2] sm:$0xff]
    %v45 = vld [vmem:[#allocation2 + $0x8] sm:$0xff]
    %v46 = vld [vmem:[#allocation2 + $0x10] sm:$0xff]
    %v47 = vld [vmem:[#allocation2 + $0x18] sm:$0xff]
    %v48 = vld [vmem:[#allocation2 + $0x20] sm:$0xff]
    %v49 = vld [vmem:[#allocation2 + $0x28] sm:$0xff]
    %v50 = vld [vmem:[#allocation2 + $0x30] sm:$0xff]
    %v51 = vld [vmem:[#allocation2 + $0x38] sm:$0xff]
    %v52 = vld [vmem:[#allocation2 + $0x40] sm:$0xff]
    %v53 = vld [vmem:[#allocation2 + $0x48] sm:$0xff]
    %v54 = vld [vmem:[#allocation2 + $0x50] sm:$0xff]
    %v55 = vld [vmem:[#allocation2 + $0x58] sm:$0xff]
    %v56 = vld [vmem:[#allocation2 + $0x60] sm:$0xff]
    %v57 = vld [vmem:[#allocation2 + $0x68] sm:$0xff]
    %v58 = vld [vmem:[#allocation2 + $0x70] sm:$0xff]
    %v59 = vld [vmem:[#allocation2 + $0x78] sm:$0xff]
    %v60 = vld [vmem:[#allocation5] sm:$0xff]
    %v61 = vld [vmem:[#allocation5 + $0x8] sm:$0xff]
    %v62 = vld [vmem:[#allocation5 + $0x10] sm:$0xff]
    %v63 = vld [vmem:[#allocation5 + $0x18] sm:$0xff]
    %v64 = vld [vmem:[#allocation5 + $0x20] sm:$0xff]
    %v65 = vld [vmem:[#allocation5 + $0x28] sm:$0xff]
    %v66 = vld [vmem:[#allocation5 + $0x30] sm:$0xff]
    %v67 = vld [vmem:[#allocation5 + $0x38] sm:$0xff]
    %v68 = vld [vmem:[#allocation5 + $0x40] sm:$0xff]
    %v69 = vld [vmem:[#allocation5 + $0x48] sm:$0xff]
    %v70 = vld [vmem:[#allocation5 + $0x50] sm:$0xff]
    %v71 = vld [vmem:[#allocation5 + $0x58] sm:$0xff]
    %v72 = vld [vmem:[#allocation5 + $0x60] sm:$0xff]
    %v73 = vld [vmem:[#allocation5 + $0x68] sm:$0xff]
    %v74 = vld [vmem:[#allocation5 + $0x70] sm:$0xff]
    %v75 = vld [vmem:[#allocation5 + $0x78] sm:$0xff]
    %76 = vmatpush.msra.mxu0 %v75
    %77 = vmatpush.msra.mxu0 %v74
    %78 = vmatpush.msra.mxu0 %v73
    %79 = vmatpush.msra.mxu0 %v72
    %80 = vmatpush.msra.mxu0 %v71
    %81 = vmatpush.msra.mxu0 %v70
    %82 = vmatpush.msra.mxu0 %v69
    %83 = vmatpush.msra.mxu0 %v68
    %84 = vmatpush.msra.mxu0 %v67
    %85 = vmatpush.msra.mxu0 %v66
    %86 = vmatpush.msra.mxu0 %v65
    %87 = vmatpush.msra.mxu0 %v64
    %88 = vmatpush.msra.mxu0 %v63
    %89 = vmatpush.msra.mxu0 %v62
    %90 = vmatpush.msra.mxu0 %v61
    %91 = vmatpush.msra.mxu0 %v60
    %92 = vmatmul.f32.gmra.mxu0 %v44
    %v93 = vpop.f32.mrf.mxu0
    %v94 = vadd.f32 0.0, %v93
    %95 = vmatmul.f32.gmra.mxu0 %v45
    %v96 = vpop.f32.mrf.mxu0
    %v97 = vadd.f32 0.0, %v96
    %98 = vmatmul.f32.gmra.mxu0 %v46
    %v99 = vpop.f32.mrf.mxu0
    %v100 = vadd.f32 0.0, %v99
    %101 = vmatmul.f32.gmra.mxu0 %v47
    %v102 = vpop.f32.mrf.mxu0
    %v103 = vadd.f32 0.0, %v102
    %104 = vmatmul.f32.gmra.mxu0 %v48
    %v105 = vpop.f32.mrf.mxu0
    %v106 = vadd.f32 0.0, %v105
    %107 = vmatmul.f32.gmra.mxu0 %v49
    %v108 = vpop.f32.mrf.mxu0
    %v109 = vadd.f32 0.0, %v108
    %110 = vmatmul.f32.gmra.mxu0 %v50
    %v111 = vpop.f32.mrf.mxu0
    %v112 = vadd.f32 0.0, %v111
    %113 = vmatmul.f32.gmra.mxu0 %v51
    %v114 = vpop.f32.mrf.mxu0
    %v115 = vadd.f32 0.0, %v114
    %116 = vmatmul.f32.gmra.mxu0 %v52
    %v117 = vpop.f32.mrf.mxu0
    %v118 = vadd.f32 0.0, %v117
    %119 = vmatmul.f32.gmra.mxu0 %v53
    %v120 = vpop.f32.mrf.mxu0
    %v121 = vadd.f32 0.0, %v120
    %122 = vmatmul.f32.gmra.mxu0 %v54
    %v123 = vpop.f32.mrf.mxu0
    %v124 = vadd.f32 0.0, %v123
    %125 = vmatmul.f32.gmra.mxu0 %v55
    %v126 = vpop.f32.mrf.mxu0
    %v127 = vadd.f32 0.0, %v126
    %128 = vmatmul.f32.gmra.mxu0 %v56
    %v129 = vpop.f32.mrf.mxu0
    %v130 = vadd.f32 0.0, %v129
    %131 = vmatmul.f32.gmra.mxu0 %v57
    %v132 = vpop.f32.mrf.mxu0
    %v133 = vadd.f32 0.0, %v132
    %134 = vmatmul.f32.gmra.mxu0 %v58
    %v135 = vpop.f32.mrf.mxu0
    %v136 = vadd.f32 0.0, %v135
    %137 = vmatmul.f32.gmra.mxu0 %v59
    %v138 = vpop.f32.mrf.mxu0
    %v139 = vadd.f32 0.0, %v138
    %140 = vdwg.mxu0
    %v141 = vpack.c.bf16 %v94, %v94
    %v142 = vpack.c.bf16 %v97, %v97
    %v143 = vpack.c.bf16 %v100, %v100
    %v144 = vpack.c.bf16 %v103, %v103
    %v145 = vpack.c.bf16 %v106, %v106
    %v146 = vpack.c.bf16 %v109, %v109
    %v147 = vpack.c.bf16 %v112, %v112
    %v148 = vpack.c.bf16 %v115, %v115
    %v149 = vpack.c.bf16 %v118, %v118
    %v150 = vpack.c.bf16 %v121, %v121
    %v151 = vpack.c.bf16 %v124, %v124
    %v152 = vpack.c.bf16 %v127, %v127
    %v153 = vpack.c.bf16 %v130, %v130
    %v154 = vpack.c.bf16 %v133, %v133
    %v155 = vpack.c.bf16 %v136, %v136
    %v156 = vpack.c.bf16 %v139, %v139
    %157 = vst [vmem:[#allocation7] sm:$0xf] %v141
    %158 = vst [vmem:[#allocation7 + $0x4] sm:$0xf] %v142
    %159 = vst [vmem:[#allocation7 + $0x8] sm:$0xf] %v143
    %160 = vst [vmem:[#allocation7 + $0xc] sm:$0xf] %v144
    %161 = vst [vmem:[#allocation7 + $0x10] sm:$0xf] %v145
    %162 = vst [vmem:[#allocation7 + $0x14] sm:$0xf] %v146
    %163 = vst [vmem:[#allocation7 + $0x18] sm:$0xf] %v147
    %164 = vst [vmem:[#allocation7 + $0x1c] sm:$0xf] %v148
    %165 = vst [vmem:[#allocation7 + $0x20] sm:$0xf] %v149
    %166 = vst [vmem:[#allocation7 + $0x24] sm:$0xf] %v150
    %167 = vst [vmem:[#allocation7 + $0x28] sm:$0xf] %v151
    %168 = vst [vmem:[#allocation7 + $0x2c] sm:$0xf] %v152
    %169 = vst [vmem:[#allocation7 + $0x30] sm:$0xf] %v153
    %170 = vst [vmem:[#allocation7 + $0x34] sm:$0xf] %v154
    %171 = vst [vmem:[#allocation7 + $0x38] sm:$0xf] %v155
    %172 = vst [vmem:[#allocation7 + $0x3c] sm:$0xf] %v156
    // Predicated region
    $region18: #{tpu_custom_call.1} parent=1 // pred_check
      _
    $region19: #{tpu_custom_call.1} parent=1 // pred_check_branch
      %174 = sbr.rel (0) target = $region21
    $region20: #{tpu_custom_call.1} parent=1 // pred_region
      %176 = vsyncadd [#allocation4], 0
      %s177 = sshll.u32 [#allocation7], 4
      %s178 = int_to_ptr.vmem [resolvable:$true] %s177
      %s179 = sshll.u32 %s2, 4
      %s180 = int_to_ptr.hbm [resolvable:$true] %s179
      %185 = dma.vmem_to_hbm [thread:$0]  %s178, 1024, %s180, [#allocation4], 64, 64, 4
    $region21: #{tpu_custom_call.1} parent=1 // pred_fallthru
      _
    // Predicated region
    $region22: #{tpu_custom_call.1} parent=1 // pred_check
      _
    $region23: #{tpu_custom_call.1} parent=1 // pred_check_branch
      %187 = sbr.rel (0) target = $region25
    $region24: #{tpu_custom_call.1} parent=1 // pred_region
      %189 = dma.done [#allocation4], 1024
    $region25: #{tpu_custom_call.1} parent=1 // pred_fallthru
      _
    %190 = vsyncpa [#allocation3], 1
    %191 = vsyncpa [#allocation6], 1
    %192 = vsyncpa [#allocation4], 1

</llo_original>
